<compile_context>
chip_gen: v7x
topology: tpu7x:2x2x1
jax: 0.10.0
libtpu: 0.0.40
codegen_flags: <defaults>
</compile_context>

<pallas_src>
import functools

import jax
import jax.numpy as jnp
import numpy as np
from jax import lax
from jax.experimental import pallas as pl
from jax.experimental.pallas import tpu as pltpu


def _round_up(x, m):
    return ((x + m - 1) // m) * m


def momentum_loss_kernel(
    ui_ref, d_ui_i_ref, d_ui_j_ref, uj_ref,
    dd_ui_i_ref, dd_ui_j_ref, d_p_i_ref, f_i_ref,
    out_ref, acc_ref, *, n_internal, tile_n, mu, need_mask,
):
    n = pl.program_id(1)

    @pl.when(n == 0)
    def _():
        acc_ref[...] = jnp.zeros_like(acc_ref)

    ui      = ui_ref[0]        # (tile_n, D)
    d_ui_i  = d_ui_i_ref[0]
    d_ui_j  = d_ui_j_ref[0]
    uj      = uj_ref[0]
    dd_ui_i = dd_ui_i_ref[0]
    dd_ui_j = dd_ui_j_ref[0]
    d_p_i   = d_p_i_ref[0]
    f_i     = f_i_ref[0]

    res = (d_ui_i * ui + d_ui_j * uj
           - mu * (dd_ui_i + dd_ui_j)
           + d_p_i - f_i)

    if need_mask:
        # Mask rows >= n_internal in the (only possibly partial) tail tile.
        row = n * tile_n + lax.broadcasted_iota(jnp.int32, res.shape, 0)
        res = jnp.where(row < n_internal, res, 0.0)

    sq = res * res                              # (tile_n, D), f32
    d = sq.shape[-1]
    # Fold sublane groups into the (8, D) accumulator — pure VPU adds.
    acc_ref[...] += sq.reshape(tile_n // 8, 8, d).sum(axis=0)

    @pl.when(n == pl.num_programs(1) - 1)
    def _():
        out_ref[0, :, :] = acc_ref[...]


def momentum_loss(ui, d_ui_i, d_ui_j, uj, dd_ui_i, dd_ui_j, d_p_i, f_i,
                  *, n_internal, mu, tile_n_target=2048):
    B, N, D = ui.shape
    assert 0 < n_internal <= N

    # Sublane-aligned tile over the first n_internal rows only.
    tile_n = max(8, min(_round_up(n_internal, 8), _round_up(tile_n_target, 8)))
    n_tiles = pl.cdiv(n_internal, tile_n)
    need_mask = (n_internal % tile_n) != 0

    kernel = functools.partial(
        momentum_loss_kernel,
        n_internal=n_internal,
        tile_n=tile_n,
        mu=float(mu),
        need_mask=need_mask,
    )

    in_spec = pl.BlockSpec((1, tile_n, D), lambda b, n: (b, n, 0))
    out_spec = pl.BlockSpec((1, 8, D), lambda b, n: (b, 0, 0))

    partials = pl.pallas_call(
        kernel,
        out_shape=jax.ShapeDtypeStruct((B, 8, D), jnp.float32),
        grid_spec=pltpu.PrefetchScalarGridSpec(
            num_scalar_prefetch=0,
            grid=(B, n_tiles),
            in_specs=[in_spec] * 8,
            out_specs=out_spec,
            scratch_shapes=[pltpu.VMEM((8, D), jnp.float32)],
        ),
        compiler_params=pltpu.CompilerParams(
            dimension_semantics=("parallel", "arbitrary"),
            vmem_limit_bytes=32 * 1024 * 1024,
        ),
    )(ui, d_ui_i, d_ui_j, uj, dd_ui_i, dd_ui_j, d_p_i, f_i)

    # Final tiny cross-lane reduce + mean normalization in the wrapper.
    count = B * n_internal * D
    return jnp.sum(partials) / jnp.float32(count)


def momentum_loss_ref(ui, d_ui_i, d_ui_j, uj, dd_ui_i, dd_ui_j, d_p_i, f_i,
                      *, n_internal, mu):
    res = (d_ui_i * ui + d_ui_j * uj - mu * (dd_ui_i + dd_ui_j) + d_p_i - f_i)
    res = res[:, :n_internal, :]
    return jnp.mean(res * res)


if __name__ == "__main__":
    # Module "parameters" (from __init__): n_internal, mu — deterministic.
    mu = 0.01
    B, N, D = 2, 16, 128  # N >= n_internal; D lane-aligned to 128

    key = jax.random.PRNGKey(0)
    keys = jax.random.split(key, 8)
    args = [jax.random.normal(k, (B, N, D), dtype=jnp.float32) for k in keys]

    # Case 1: n_internal multiple of the tile (no tail mask).
    n_internal = 8
    loss = momentum_loss(*args, n_internal=n_internal, mu=mu)
    loss = jax.block_until_ready(loss)
    ref = momentum_loss_ref(*args, n_internal=n_internal, mu=mu)
    np.testing.assert_allclose(np.asarray(loss), np.asarray(ref),
                               rtol=1e-5, atol=1e-6)

    # Case 2: n_internal not a multiple of 8 (exercises the tail mask path).
    n_internal2 = 5
    loss2 = momentum_loss(*args, n_internal=n_internal2, mu=mu)
    loss2 = jax.block_until_ready(loss2)
    ref2 = momentum_loss_ref(*args, n_internal=n_internal2, mu=mu)
    np.testing.assert_allclose(np.asarray(loss2), np.asarray(ref2),
                               rtol=1e-5, atol=1e-6)

    print("KERNEL_OK")
</pallas_src>

<mosaic_0001>
module attributes {stable_mosaic.version = 11 : i64} {
  func.func @momentum_loss_kernel(%arg0: i32, %arg1: i32, %arg2: memref<1x8x128xf32, #tpu.memory_space<vmem>>, %arg3: memref<1x8x128xf32, #tpu.memory_space<vmem>>, %arg4: memref<1x8x128xf32, #tpu.memory_space<vmem>>, %arg5: memref<1x8x128xf32, #tpu.memory_space<vmem>>, %arg6: memref<1x8x128xf32, #tpu.memory_space<vmem>>, %arg7: memref<1x8x128xf32, #tpu.memory_space<vmem>>, %arg8: memref<1x8x128xf32, #tpu.memory_space<vmem>>, %arg9: memref<1x8x128xf32, #tpu.memory_space<vmem>>, %arg10: memref<1x8x128xf32, #tpu.memory_space<vmem>>, %arg11: memref<8x128xf32, #tpu.memory_space<vmem>>) attributes {dimension_semantics = [#tpu.dimension_semantics<parallel>, #tpu.dimension_semantics<arbitrary>], iteration_bounds = array<i64: 2, 1>, scalar_prefetch = 0 : i64, scratch_operands = 1 : i64, tpu.core_type = #tpu.core_type<tc>, window_params = [{transform_indices = @transform_0, window_bounds = array<i64: 1, 8, 128>}, {transform_indices = @transform_1, window_bounds = array<i64: 1, 8, 128>}, {transform_indices = @transform_2, window_bounds = array<i64: 1, 8, 128>}, {transform_indices = @transform_3, window_bounds = array<i64: 1, 8, 128>}, {transform_indices = @transform_4, window_bounds = array<i64: 1, 8, 128>}, {transform_indices = @transform_5, window_bounds = array<i64: 1, 8, 128>}, {transform_indices = @transform_6, window_bounds = array<i64: 1, 8, 128>}, {transform_indices = @transform_7, window_bounds = array<i64: 1, 8, 128>}, {transform_indices = @transform_8, window_bounds = array<i64: 1, 8, 128>}]} {
    %c0_i32 = arith.constant 0 : i32
    %0 = arith.cmpi eq, %arg1, %c0_i32 : i32
    %1 = arith.extui %0 : i1 to i32
    %c0_i32_0 = arith.constant 0 : i32
    %2 = arith.cmpi ne, %1, %c0_i32_0 : i32
    scf.if %2 {
      %cst_31 = arith.constant 0.000000e+00 : f32
      %37 = vector.broadcast %cst_31 : f32 to vector<8x128xf32>
      %c0_32 = arith.constant 0 : index
      %c0_33 = arith.constant 0 : index
      %38 = vector.load %arg11[%c0_32, %c0_33] : memref<8x128xf32, #tpu.memory_space<vmem>>, vector<8x128xf32>
      tpu.vector_store %arg11[%c0_32, %c0_33], %37 {strides = array<i32>} : memref<8x128xf32, #tpu.memory_space<vmem>>, vector<8x128xf32>,
    } else {
    }
    %c0 = arith.constant 0 : index
    %c0_1 = arith.constant 0 : index
    %c0_2 = arith.constant 0 : index
    %3 = vector.load %arg2[%c0, %c0_1, %c0_2] : memref<1x8x128xf32, #tpu.memory_space<vmem>>, vector<1x8x128xf32>
    %4 = vector.shape_cast %3 : vector<1x8x128xf32> to vector<8x128xf32>
    %c0_3 = arith.constant 0 : index
    %c0_4 = arith.constant 0 : index
    %c0_5 = arith.constant 0 : index
    %5 = vector.load %arg3[%c0_3, %c0_4, %c0_5] : memref<1x8x128xf32, #tpu.memory_space<vmem>>, vector<1x8x128xf32>
    %6 = vector.shape_cast %5 : vector<1x8x128xf32> to vector<8x128xf32>
    %c0_6 = arith.constant 0 : index
    %c0_7 = arith.constant 0 : index
    %c0_8 = arith.constant 0 : index
    %7 = vector.load %arg4[%c0_6, %c0_7, %c0_8] : memref<1x8x128xf32, #tpu.memory_space<vmem>>, vector<1x8x128xf32>
    %8 = vector.shape_cast %7 : vector<1x8x128xf32> to vector<8x128xf32>
    %c0_9 = arith.constant 0 : index
    %c0_10 = arith.constant 0 : index
    %c0_11 = arith.constant 0 : index
    %9 = vector.load %arg5[%c0_9, %c0_10, %c0_11] : memref<1x8x128xf32, #tpu.memory_space<vmem>>, vector<1x8x128xf32>
    %10 = vector.shape_cast %9 : vector<1x8x128xf32> to vector<8x128xf32>
    %c0_12 = arith.constant 0 : index
    %c0_13 = arith.constant 0 : index
    %c0_14 = arith.constant 0 : index
    %11 = vector.load %arg6[%c0_12, %c0_13, %c0_14] : memref<1x8x128xf32, #tpu.memory_space<vmem>>, vector<1x8x128xf32>
    %12 = vector.shape_cast %11 : vector<1x8x128xf32> to vector<8x128xf32>
    %c0_15 = arith.constant 0 : index
    %c0_16 = arith.constant 0 : index
    %c0_17 = arith.constant 0 : index
    %13 = vector.load %arg7[%c0_15, %c0_16, %c0_17] : memref<1x8x128xf32, #tpu.memory_space<vmem>>, vector<1x8x128xf32>
    %14 = vector.shape_cast %13 : vector<1x8x128xf32> to vector<8x128xf32>
    %c0_18 = arith.constant 0 : index
    %c0_19 = arith.constant 0 : index
    %c0_20 = arith.constant 0 : index
    %15 = vector.load %arg8[%c0_18, %c0_19, %c0_20] : memref<1x8x128xf32, #tpu.memory_space<vmem>>, vector<1x8x128xf32>
    %16 = vector.shape_cast %15 : vector<1x8x128xf32> to vector<8x128xf32>
    %c0_21 = arith.constant 0 : index
    %c0_22 = arith.constant 0 : index
    %c0_23 = arith.constant 0 : index
    %17 = vector.load %arg9[%c0_21, %c0_22, %c0_23] : memref<1x8x128xf32, #tpu.memory_space<vmem>>, vector<1x8x128xf32>
    %18 = vector.shape_cast %17 : vector<1x8x128xf32> to vector<8x128xf32>
    %19 = arith.mulf %6, %4 : vector<8x128xf32>
    %20 = arith.mulf %8, %10 : vector<8x128xf32>
    %21 = arith.addf %19, %20 : vector<8x128xf32>
    %22 = arith.addf %12, %14 : vector<8x128xf32>
    %cst = arith.constant 0.00999999977 : f32
    %23 = vector.broadcast %cst : f32 to vector<8x128xf32>
    %24 = arith.mulf %23, %22 : vector<8x128xf32>
    %25 = arith.subf %21, %24 : vector<8x128xf32>
    %26 = arith.addf %25, %16 : vector<8x128xf32>
    %27 = arith.subf %26, %18 : vector<8x128xf32>
    %28 = arith.mulf %27, %27 : vector<8x128xf32>
    %c0_24 = arith.constant 0 : index
    %c0_25 = arith.constant 0 : index
    %29 = vector.load %arg11[%c0_24, %c0_25] : memref<8x128xf32, #tpu.memory_space<vmem>>, vector<8x128xf32>
    %30 = vector.shape_cast %28 : vector<8x128xf32> to vector<1x8x128xf32>
    %cst_26 = arith.constant dense<0.000000e+00> : vector<8x128xf32>
    %31 = vector.multi_reduction <add>, %30, %cst_26 [0] : vector<1x8x128xf32> to vector<8x128xf32>
    %32 = arith.addf %29, %31 : vector<8x128xf32>
    %c0_27 = arith.constant 0 : index
    %c0_28 = arith.constant 0 : index
    %33 = vector.load %arg11[%c0_27, %c0_28] : memref<8x128xf32, #tpu.memory_space<vmem>>, vector<8x128xf32>
    tpu.vector_store %arg11[%c0_27, %c0_28], %32 {strides = array<i32>} : memref<8x128xf32, #tpu.memory_space<vmem>>, vector<8x128xf32>,
    %c0_i32_29 = arith.constant 0 : i32
    %34 = arith.cmpi eq, %arg1, %c0_i32_29 : i32
    %35 = arith.extui %34 : i1 to i32
    %c0_i32_30 = arith.constant 0 : i32
    %36 = arith.cmpi ne, %35, %c0_i32_30 : i32
    scf.if %36 {
      %c0_31 = arith.constant 0 : index
      %c0_32 = arith.constant 0 : index
      %37 = vector.load %arg11[%c0_31, %c0_32] : memref<8x128xf32, #tpu.memory_space<vmem>>, vector<8x128xf32>
      %c0_33 = arith.constant 0 : index
      %c0_34 = arith.constant 0 : index
      %c0_35 = arith.constant 0 : index
      %38 = vector.load %arg10[%c0_33, %c0_34, %c0_35] : memref<1x8x128xf32, #tpu.memory_space<vmem>>, vector<1x8x128xf32>
      %39 = vector.shape_cast %38 : vector<1x8x128xf32> to vector<8x128xf32>
      %40 = vector.shape_cast %37 : vector<8x128xf32> to vector<1x8x128xf32>
      tpu.vector_store %arg10[%c0_33, %c0_34, %c0_35], %40 {strides = array<i32>} : memref<1x8x128xf32, #tpu.memory_space<vmem>>, vector<1x8x128xf32>,
    } else {
    }
    return
  }
  func.func @transform_0(%arg0: i32, %arg1: i32) -> (i32, i32, i32) {
    %c0_i32 = arith.constant 0 : i32
    %c0_i32_0 = arith.constant 0 : i32
    return %arg0, %arg1, %c0_i32 : i32, i32, i32
  }
  func.func @transform_1(%arg0: i32, %arg1: i32) -> (i32, i32, i32) {
    %c0_i32 = arith.constant 0 : i32
    %c0_i32_0 = arith.constant 0 : i32
    return %arg0, %arg1, %c0_i32 : i32, i32, i32
  }
  func.func @transform_2(%arg0: i32, %arg1: i32) -> (i32, i32, i32) {
    %c0_i32 = arith.constant 0 : i32
    %c0_i32_0 = arith.constant 0 : i32
    return %arg0, %arg1, %c0_i32 : i32, i32, i32
  }
  func.func @transform_3(%arg0: i32, %arg1: i32) -> (i32, i32, i32) {
    %c0_i32 = arith.constant 0 : i32
    %c0_i32_0 = arith.constant 0 : i32
    return %arg0, %arg1, %c0_i32 : i32, i32, i32
  }
  func.func @transform_4(%arg0: i32, %arg1: i32) -> (i32, i32, i32) {
    %c0_i32 = arith.constant 0 : i32
    %c0_i32_0 = arith.constant 0 : i32
    return %arg0, %arg1, %c0_i32 : i32, i32, i32
  }
  func.func @transform_5(%arg0: i32, %arg1: i32) -> (i32, i32, i32) {
    %c0_i32 = arith.constant 0 : i32
    %c0_i32_0 = arith.constant 0 : i32
    return %arg0, %arg1, %c0_i32 : i32, i32, i32
  }
  func.func @transform_6(%arg0: i32, %arg1: i32) -> (i32, i32, i32) {
    %c0_i32 = arith.constant 0 : i32
    %c0_i32_0 = arith.constant 0 : i32
    return %arg0, %arg1, %c0_i32 : i32, i32, i32
  }
  func.func @transform_7(%arg0: i32, %arg1: i32) -> (i32, i32, i32) {
    %c0_i32 = arith.constant 0 : i32
    %c0_i32_0 = arith.constant 0 : i32
    return %arg0, %arg1, %c0_i32 : i32, i32, i32
  }
  func.func @transform_8(%arg0: i32, %arg1: i32) -> (i32, i32, i32) {
    %c0_i32 = arith.constant 0 : i32
    %c0_i32_0 = arith.constant 0 : i32
    %c0_i32_1 = arith.constant 0 : i32
    return %arg0, %c0_i32, %c0_i32_0 : i32, i32, i32
  }
}

</mosaic_0001>

<llo_original>
// kernel: tpu_custom_call.1
$region0: #{tpu_custom_call.1}
  #allocation0 [shape = 'u32[]', space=smem, size = 0x4, offset = 0x4, fixed_abs, tag = 'smem constant byte address 0x4 - core index']
  #allocation1 [shape = 'u32[144,128]{1,0:T(1,128)}', space=vmem, size = 0x12000, scoped, tag = 'internal scratch']
  #allocation2 [shape = 'f32[8,128]{1,0:T(8,128)}', space=vmem, size = 0x1000, scoped, tag = 'scratch operand']
  %s0 = inlined_call_operand.hbm [shape: f32[2,16,128], index: 0, kind: input, shape index: {}]
  %s1 = inlined_call_operand.hbm [shape: f32[2,16,128], index: 1, kind: input, shape index: {}]
  %s2 = inlined_call_operand.hbm [shape: f32[2,16,128], index: 2, kind: input, shape index: {}]
  %s3 = inlined_call_operand.hbm [shape: f32[2,16,128], index: 3, kind: input, shape index: {}]
  %s4 = inlined_call_operand.hbm [shape: f32[2,16,128], index: 4, kind: input, shape index: {}]
  %s5 = inlined_call_operand.hbm [shape: f32[2,16,128], index: 5, kind: input, shape index: {}]
  %s6 = inlined_call_operand.hbm [shape: f32[2,16,128], index: 6, kind: input, shape index: {}]
  %s7 = inlined_call_operand.hbm [shape: f32[2,16,128], index: 7, kind: input, shape index: {}]
  %s8 = inlined_call_operand.hbm [shape: f32[2,8,128], index: 8, kind: output, shape index: {}]
  %s9 = sld [smem:[#allocation0]]
  $region105: #{tpu_custom_call.1} parent=0
    _
  %s11 = ssub.s32 1, %s9
  %s12 = scalar_select 0, %s11, %s9
  $region1: #{tpu_custom_call.1} parent=0
    #allocation3 [shape = 'u8[8192]{0}', space=vmem, size = 0x2000, scoped, tag = 'input window, operand 0']
    #allocation4 [shape = 's32[2]{0}', space=sflag, size = 0x8, scoped, tag = 'scoped memory for tpu_custom_call.1']
    #allocation5 [shape = 's32[2]{0}', space=sflag, size = 0x8, scoped, tag = 'scoped memory for tpu_custom_call.1']
    #allocation6 [shape = 'u8[8192]{0}', space=vmem, size = 0x2000, scoped, tag = 'input window, operand 1']
    #allocation7 [shape = 's32[2]{0}', space=sflag, size = 0x8, scoped, tag = 'scoped memory for tpu_custom_call.1']
    #allocation8 [shape = 'u8[8192]{0}', space=vmem, size = 0x2000, scoped, tag = 'input window, operand 2']
    #allocation9 [shape = 'u8[8192]{0}', space=vmem, size = 0x2000, scoped, tag = 'input window, operand 3']
    #allocation10 [shape = 's32[2]{0}', space=sflag, size = 0x8, scoped, tag = 'scoped memory for tpu_custom_call.1']
    #allocation11 [shape = 'u8[8192]{0}', space=vmem, size = 0x2000, scoped, tag = 'input window, operand 4']
    #allocation12 [shape = 'u8[8192]{0}', space=vmem, size = 0x2000, scoped, tag = 'input window, operand 5']
    #allocation13 [shape = 's32[2]{0}', space=sflag, size = 0x8, scoped, tag = 'scoped memory for tpu_custom_call.1']
    #allocation14 [shape = 'u8[8192]{0}', space=vmem, size = 0x2000, scoped, tag = 'input window, operand 6']
    #allocation15 [shape = 'u8[8192]{0}', space=vmem, size = 0x2000, scoped, tag = 'input window, operand 7']
    #allocation16 [shape = 's32[2]{0}', space=sflag, size = 0x8, scoped, tag = 'scoped memory for tpu_custom_call.1']
    #allocation17 [shape = 'u8[8192]{0}', space=vmem, size = 0x2000, scoped, tag = 'output window, operand 0']
    %13 = vsyncpa [#allocation4], 0
    %s14 = scalar_lea.sflag [#allocation4], 1
    %15 = vsyncpa %s14, 0
    %16 = vsyncpa [#allocation7], 0
    %s17 = scalar_lea.sflag [#allocation7], 1
    %18 = vsyncpa %s17, 0
    %19 = vsyncpa [#allocation10], 0
    %s20 = scalar_lea.sflag [#allocation10], 1
    %21 = vsyncpa %s20, 0
    %22 = vsyncpa [#allocation13], 0
    %s23 = scalar_lea.sflag [#allocation13], 1
    %24 = vsyncpa %s23, 0
    %25 = vsyncpa [#allocation16], 0
    %s26 = scalar_lea.sflag [#allocation16], 1
    %27 = vsyncpa %s26, 0
    %28 = vsyncpa [#allocation5], 0
    %s29 = scalar_lea.sflag [#allocation5], 1
    %30 = vsyncpa %s29, 0
    loop: start=0, step=1, limit=4
    $region2: #{tpu_custom_call.1} parent=1 // loop_pre_header
      _
    $region3: #{tpu_custom_call.1} parent=1 // loop_header
      %s32 = sphi 0, %s36
      %p33 = scmp.ge.s32.totalorder %s32, 4
      %s39 = sphi 0, %s51
      %s40 = sphi 0, %s47
      %s41 = sphi 0, %s39
      %s42 = sphi 0, %s40
      %s43 = sphi 0, %s41
      %s44 = sphi 0, %s42
      %s56 = sphi 0, %s58
      %s59 = sphi 0, %s56
      %s60 = sphi 0, %s59
      %s76 = sphi 0, %s60
      %s84 = sphi 0, %s86
      %s87 = sphi 0, %s84
      %s88 = sphi 0, %s87
      %s104 = sphi 0, %s88
      %s112 = sphi 0, %s114
      %s115 = sphi 0, %s112
      %s116 = sphi 0, %s115
      %s132 = sphi 0, %s116
      %s140 = sphi 0, %s142
      %s143 = sphi 0, %s140
      %s144 = sphi 0, %s143
      %s160 = sphi 0, %s144
      %s168 = sphi 0, %s170
      %s171 = sphi 0, %s168
      %s172 = sphi 0, %s171
      %s188 = sphi 0, %s172
      %s196 = sphi 0, %s198
      %s199 = sphi 0, %s196
      %s200 = sphi 0, %s199
      %s216 = sphi 0, %s200
      %s224 = sphi 0, %s226
      %s227 = sphi 0, %s224
      %s228 = sphi 0, %s227
      %s244 = sphi 0, %s228
      %s252 = sphi 0, %s254
      %s255 = sphi 0, %s252
      %s256 = sphi 0, %s255
      %s272 = sphi 0, %s256
      %s278 = sphi 0, %s280
      %s281 = sphi 0, %s278
      %s282 = sphi 0, %s281
      %s298 = sphi 0, %s282
    $region4: #{tpu_custom_call.1} parent=1 // loop_header_branch
      %35 = sbr.rel (%p33) target = $region8
    $region5: #{tpu_custom_call.1} parent=1 // loop_body
      %s37 = ssub.s32 %s32, 1
      %s38 = ssub.s32 %s32, 2
      %s45 = sadd.s32 1, %s40
      %p46 = scmp.ge.s32.totalorder %s45, 1
      %s47 = scalar_select %p46, 0, %s45
      %s48 = sadd.s32 1, %s39
      %s49 = scalar_select %p46, %s48, %s39
      %p50 = scmp.ge.s32.totalorder %s49, 2
      %s51 = scalar_select %p50, 0, %s49
      %s52 = ssub.s32 %s39, %s51
      %s53 = ssub.s32 %s40, %s47
      %s54 = sor.u32 %s52, %s53
      %p55 = scmp.eq.s32.totalorder %s54, 0
      %s57 = sadd.s32 %s56, 1
      %s58 = scalar_select %p55, %s56, %s57
      %p61 = pneg %p55
      %p62 = scmp.eq.s32.totalorder %s32, 1
      %p63 = por %p61, %p62
      %p64 = scmp.ne.s32.totalorder %s56, %s59
      %p65 = scmp.eq.s32.totalorder %s32, 0
      %p66 = por %p64, %p65
      %p67 = scmp.ne.s32.totalorder %s56, %s59
      %p68 = scmp.eq.s32.totalorder %s37, 1
      %p69 = por %p67, %p68
      %p70 = scmp.ne.s32.totalorder %s59, %s60
      %p71 = scmp.eq.s32.totalorder %s37, 0
      %p72 = por %p70, %p71
      %p73 = scmp.ne.s32.totalorder %s59, %s60
      %p74 = scmp.eq.s32.totalorder %s38, 1
      %p75 = por %p73, %p74
      %p77 = scmp.ne.s32.totalorder %s60, %s76
      %p78 = scmp.eq.s32.totalorder %s38, 0
      %p79 = por %p77, %p78
      %s80 = ssub.s32 %s39, %s51
      %s81 = ssub.s32 %s40, %s47
      %s82 = sor.u32 %s80, %s81
      %p83 = scmp.eq.s32.totalorder %s82, 0
      %s85 = sadd.s32 %s84, 1
      %s86 = scalar_select %p83, %s84, %s85
      %p89 = pneg %p83
      %p90 = scmp.eq.s32.totalorder %s32, 1
      %p91 = por %p89, %p90
      %p92 = scmp.ne.s32.totalorder %s84, %s87
      %p93 = scmp.eq.s32.totalorder %s32, 0
      %p94 = por %p92, %p93
      %p95 = scmp.ne.s32.totalorder %s84, %s87
      %p96 = scmp.eq.s32.totalorder %s37, 1
      %p97 = por %p95, %p96
      %p98 = scmp.ne.s32.totalorder %s87, %s88
      %p99 = scmp.eq.s32.totalorder %s37, 0
      %p100 = por %p98, %p99
      %p101 = scmp.ne.s32.totalorder %s87, %s88
      %p102 = scmp.eq.s32.totalorder %s38, 1
      %p103 = por %p101, %p102
      %p105 = scmp.ne.s32.totalorder %s88, %s104
      %p106 = scmp.eq.s32.totalorder %s38, 0
      %p107 = por %p105, %p106
      %s108 = ssub.s32 %s39, %s51
      %s109 = ssub.s32 %s40, %s47
      %s110 = sor.u32 %s108, %s109
      %p111 = scmp.eq.s32.totalorder %s110, 0
      %s113 = sadd.s32 %s112, 1
      %s114 = scalar_select %p111, %s112, %s113
      %p117 = pneg %p111
      %p118 = scmp.eq.s32.totalorder %s32, 1
      %p119 = por %p117, %p118
      %p120 = scmp.ne.s32.totalorder %s112, %s115
      %p121 = scmp.eq.s32.totalorder %s32, 0
      %p122 = por %p120, %p121
      %p123 = scmp.ne.s32.totalorder %s112, %s115
      %p124 = scmp.eq.s32.totalorder %s37, 1
      %p125 = por %p123, %p124
      %p126 = scmp.ne.s32.totalorder %s115, %s116
      %p127 = scmp.eq.s32.totalorder %s37, 0
      %p128 = por %p126, %p127
      %p129 = scmp.ne.s32.totalorder %s115, %s116
      %p130 = scmp.eq.s32.totalorder %s38, 1
      %p131 = por %p129, %p130
      %p133 = scmp.ne.s32.totalorder %s116, %s132
      %p134 = scmp.eq.s32.totalorder %s38, 0
      %p135 = por %p133, %p134
      %s136 = ssub.s32 %s39, %s51
      %s137 = ssub.s32 %s40, %s47
      %s138 = sor.u32 %s136, %s137
      %p139 = scmp.eq.s32.totalorder %s138, 0
      %s141 = sadd.s32 %s140, 1
      %s142 = scalar_select %p139, %s140, %s141
      %p145 = pneg %p139
      %p146 = scmp.eq.s32.totalorder %s32, 1
      %p147 = por %p145, %p146
      %p148 = scmp.ne.s32.totalorder %s140, %s143
      %p149 = scmp.eq.s32.totalorder %s32, 0
      %p150 = por %p148, %p149
      %p151 = scmp.ne.s32.totalorder %s140, %s143
      %p152 = scmp.eq.s32.totalorder %s37, 1
      %p153 = por %p151, %p152
      %p154 = scmp.ne.s32.totalorder %s143, %s144
      %p155 = scmp.eq.s32.totalorder %s37, 0
      %p156 = por %p154, %p155
      %p157 = scmp.ne.s32.totalorder %s143, %s144
      %p158 = scmp.eq.s32.totalorder %s38, 1
      %p159 = por %p157, %p158
      %p161 = scmp.ne.s32.totalorder %s144, %s160
      %p162 = scmp.eq.s32.totalorder %s38, 0
      %p163 = por %p161, %p162
      %s164 = ssub.s32 %s39, %s51
      %s165 = ssub.s32 %s40, %s47
      %s166 = sor.u32 %s164, %s165
      %p167 = scmp.eq.s32.totalorder %s166, 0
      %s169 = sadd.s32 %s168, 1
      %s170 = scalar_select %p167, %s168, %s169
      %p173 = pneg %p167
      %p174 = scmp.eq.s32.totalorder %s32, 1
      %p175 = por %p173, %p174
      %p176 = scmp.ne.s32.totalorder %s168, %s171
      %p177 = scmp.eq.s32.totalorder %s32, 0
      %p178 = por %p176, %p177
      %p179 = scmp.ne.s32.totalorder %s168, %s171
      %p180 = scmp.eq.s32.totalorder %s37, 1
      %p181 = por %p179, %p180
      %p182 = scmp.ne.s32.totalorder %s171, %s172
      %p183 = scmp.eq.s32.totalorder %s37, 0
      %p184 = por %p182, %p183
      %p185 = scmp.ne.s32.totalorder %s171, %s172
      %p186 = scmp.eq.s32.totalorder %s38, 1
      %p187 = por %p185, %p186
      %p189 = scmp.ne.s32.totalorder %s172, %s188
      %p190 = scmp.eq.s32.totalorder %s38, 0
      %p191 = por %p189, %p190
      %s192 = ssub.s32 %s39, %s51
      %s193 = ssub.s32 %s40, %s47
      %s194 = sor.u32 %s192, %s193
      %p195 = scmp.eq.s32.totalorder %s194, 0
      %s197 = sadd.s32 %s196, 1
      %s198 = scalar_select %p195, %s196, %s197
      %p201 = pneg %p195
      %p202 = scmp.eq.s32.totalorder %s32, 1
      %p203 = por %p201, %p202
      %p204 = scmp.ne.s32.totalorder %s196, %s199
      %p205 = scmp.eq.s32.totalorder %s32, 0
      %p206 = por %p204, %p205
      %p207 = scmp.ne.s32.totalorder %s196, %s199
      %p208 = scmp.eq.s32.totalorder %s37, 1
      %p209 = por %p207, %p208
      %p210 = scmp.ne.s32.totalorder %s199, %s200
      %p211 = scmp.eq.s32.totalorder %s37, 0
      %p212 = por %p210, %p211
      %p213 = scmp.ne.s32.totalorder %s199, %s200
      %p214 = scmp.eq.s32.totalorder %s38, 1
      %p215 = por %p213, %p214
      %p217 = scmp.ne.s32.totalorder %s200, %s216
      %p218 = scmp.eq.s32.totalorder %s38, 0
      %p219 = por %p217, %p218
      %s220 = ssub.s32 %s39, %s51
      %s221 = ssub.s32 %s40, %s47
      %s222 = sor.u32 %s220, %s221
      %p223 = scmp.eq.s32.totalorder %s222, 0
      %s225 = sadd.s32 %s224, 1
      %s226 = scalar_select %p223, %s224, %s225
      %p229 = pneg %p223
      %p230 = scmp.eq.s32.totalorder %s32, 1
      %p231 = por %p229, %p230
      %p232 = scmp.ne.s32.totalorder %s224, %s227
      %p233 = scmp.eq.s32.totalorder %s32, 0
      %p234 = por %p232, %p233
      %p235 = scmp.ne.s32.totalorder %s224, %s227
      %p236 = scmp.eq.s32.totalorder %s37, 1
      %p237 = por %p235, %p236
      %p238 = scmp.ne.s32.totalorder %s227, %s228
      %p239 = scmp.eq.s32.totalorder %s37, 0
      %p240 = por %p238, %p239
      %p241 = scmp.ne.s32.totalorder %s227, %s228
      %p242 = scmp.eq.s32.totalorder %s38, 1
      %p243 = por %p241, %p242
      %p245 = scmp.ne.s32.totalorder %s228, %s244
      %p246 = scmp.eq.s32.totalorder %s38, 0
      %p247 = por %p245, %p246
      %s248 = ssub.s32 %s39, %s51
      %s249 = ssub.s32 %s40, %s47
      %s250 = sor.u32 %s248, %s249
      %p251 = scmp.eq.s32.totalorder %s250, 0
      %s253 = sadd.s32 %s252, 1
      %s254 = scalar_select %p251, %s252, %s253
      %p257 = pneg %p251
      %p258 = scmp.eq.s32.totalorder %s32, 1
      %p259 = por %p257, %p258
      %p260 = scmp.ne.s32.totalorder %s252, %s255
      %p261 = scmp.eq.s32.totalorder %s32, 0
      %p262 = por %p260, %p261
      %p263 = scmp.ne.s32.totalorder %s252, %s255
      %p264 = scmp.eq.s32.totalorder %s37, 1
      %p265 = por %p263, %p264
      %p266 = scmp.ne.s32.totalorder %s255, %s256
      %p267 = scmp.eq.s32.totalorder %s37, 0
      %p268 = por %p266, %p267
      %p269 = scmp.ne.s32.totalorder %s255, %s256
      %p270 = scmp.eq.s32.totalorder %s38, 1
      %p271 = por %p269, %p270
      %p273 = scmp.ne.s32.totalorder %s256, %s272
      %p274 = scmp.eq.s32.totalorder %s38, 0
      %p275 = por %p273, %p274
      %s276 = ssub.s32 %s39, %s51
      %p277 = scmp.eq.s32.totalorder %s276, 0
      %s279 = sadd.s32 %s278, 1
      %s280 = scalar_select %p277, %s278, %s279
      %p283 = pneg %p277
      %p284 = scmp.eq.s32.totalorder %s32, 1
      %p285 = por %p283, %p284
      %p286 = scmp.ne.s32.totalorder %s278, %s281
      %p287 = scmp.eq.s32.totalorder %s32, 0
      %p288 = por %p286, %p287
      %p289 = scmp.ne.s32.totalorder %s278, %s281
      %p290 = scmp.eq.s32.totalorder %s37, 1
      %p291 = por %p289, %p290
      %p292 = scmp.ne.s32.totalorder %s281, %s282
      %p293 = scmp.eq.s32.totalorder %s37, 0
      %p294 = por %p292, %p293
      %p295 = scmp.ne.s32.totalorder %s281, %s282
      %p296 = scmp.eq.s32.totalorder %s38, 1
      %p297 = por %p295, %p296
      %p299 = scmp.ne.s32.totalorder %s282, %s298
      %p300 = scmp.eq.s32.totalorder %s38, 0
      %p301 = por %p299, %p300
      %p302 = scmp.le.s32.totalorder 1, %s32
      %p303 = scmp.lt.s32.totalorder %s32, 3
      %p304 = pnand %p302, %p303
      %p305 = pneg %p304
      // Predicated region
      $region9: #{tpu_custom_call.1} parent=5 // pred_check
        _
      $region10: #{tpu_custom_call.1} parent=5 // pred_check_branch
        %307 = sbr.rel (%p304) target = $region12
      $region11: #{tpu_custom_call.1} parent=5 // pred_region
        %s308 = ssub.s32 %s32, 1
      $region12: #{tpu_custom_call.1} parent=5 // pred_fallthru
        _
      %p309 = scmp.lt.s32.totalorder %s32, 2
      // Predicated region
      $region13: #{tpu_custom_call.1} parent=5 // pred_check
        %p310 = pneg %p309
      $region14: #{tpu_custom_call.1} parent=5 // pred_check_branch
        %312 = sbr.rel (%p310) target = $region16
      $region15: #{tpu_custom_call.1} parent=5 // pred_region
        // Predicated region
        $region17: #{tpu_custom_call.1} parent=15 // pred_check
          %p313 = pneg %p66
        $region18: #{tpu_custom_call.1} parent=15 // pred_check_branch
          %315 = sbr.rel (%p313) target = $region20
        $region19: #{tpu_custom_call.1} parent=15 // pred_region
          %s316 = sand.u32 %s56, 1
          %s317 = scalar_lea.sflag [#allocation4], %s316
          %s318 = sand.u32 %s56, 1
          %s319 = smul.addr %s318, 8
          %s320 = scalar_lea.vmem [#allocation3], %s319
          %s322 = ssub.s32 128, 128
          %323 = vsyncadd %s317, %s322
          %s324 = smul.addr %s39, 2
          %s325 = sadd.s32 %s40, %s324
          %s326 = smul.addr %s325, 128
          %s327 = scalar_lea.hbm %s0, %s326
          %s329 = sshll.u32 %s320, 4
          %s330 = int_to_ptr.vmem [resolvable:$true] %s329
          %332 = dma.hbm_to_vmem [thread:$0]  %s327, 128, %s330, %s317
        $region20: #{tpu_custom_call.1} parent=15 // pred_fallthru
          _
        // Predicated region
        $region21: #{tpu_custom_call.1} parent=15 // pred_check
          %p333 = pneg %p94
        $region22: #{tpu_custom_call.1} parent=15 // pred_check_branch
          %335 = sbr.rel (%p333) target = $region24
        $region23: #{tpu_custom_call.1} parent=15 // pred_region
          %s336 = sand.u32 %s32, 1
          %s337 = scalar_lea.sflag [#allocation7], %s336
          %s338 = sand.u32 %s84, 1
          %s339 = smul.addr %s338, 8
          %s340 = scalar_lea.vmem [#allocation6], %s339
          %s342 = ssub.s32 128, 128
          %343 = vsyncadd %s337, %s342
          %s344 = smul.addr %s39, 2
          %s345 = sadd.s32 %s40, %s344
          %s346 = smul.addr %s345, 128
          %s347 = scalar_lea.hbm %s1, %s346
          %s349 = sshll.u32 %s340, 4
          %s350 = int_to_ptr.vmem [resolvable:$true] %s349
          %352 = dma.hbm_to_vmem [thread:$0]  %s347, 128, %s350, %s337
        $region24: #{tpu_custom_call.1} parent=15 // pred_fallthru
          _
        // Predicated region
        $region25: #{tpu_custom_call.1} parent=15 // pred_check
          %p353 = pneg %p122
        $region26: #{tpu_custom_call.1} parent=15 // pred_check_branch
          %355 = sbr.rel (%p353) target = $region28
        $region27: #{tpu_custom_call.1} parent=15 // pred_region
          %s356 = sand.u32 %s32, 1
          %s357 = scalar_lea.sflag [#allocation7], %s356
          %s358 = sand.u32 %s112, 1
          %s359 = smul.addr %s358, 8
          %s360 = scalar_lea.vmem [#allocation8], %s359
          %s362 = ssub.s32 128, 128
          %363 = vsyncadd %s357, %s362
          %s364 = smul.addr %s39, 2
          %s365 = sadd.s32 %s40, %s364
          %s366 = smul.addr %s365, 128
          %s367 = scalar_lea.hbm %s2, %s366
          %s369 = sshll.u32 %s360, 4
          %s370 = int_to_ptr.vmem [resolvable:$true] %s369
          %372 = dma.hbm_to_vmem [thread:$0]  %s367, 128, %s370, %s357
        $region28: #{tpu_custom_call.1} parent=15 // pred_fallthru
          _
        // Predicated region
        $region29: #{tpu_custom_call.1} parent=15 // pred_check
          %p373 = pneg %p150
        $region30: #{tpu_custom_call.1} parent=15 // pred_check_branch
          %375 = sbr.rel (%p373) target = $region32
        $region31: #{tpu_custom_call.1} parent=15 // pred_region
          %s376 = sand.u32 %s32, 1
          %s377 = scalar_lea.sflag [#allocation10], %s376
          %s378 = sand.u32 %s140, 1
          %s379 = smul.addr %s378, 8
          %s380 = scalar_lea.vmem [#allocation9], %s379
          %s382 = ssub.s32 128, 128
          %383 = vsyncadd %s377, %s382
          %s384 = smul.addr %s39, 2
          %s385 = sadd.s32 %s40, %s384
          %s386 = smul.addr %s385, 128
          %s387 = scalar_lea.hbm %s3, %s386
          %s389 = sshll.u32 %s380, 4
          %s390 = int_to_ptr.vmem [resolvable:$true] %s389
          %392 = dma.hbm_to_vmem [thread:$0]  %s387, 128, %s390, %s377
        $region32: #{tpu_custom_call.1} parent=15 // pred_fallthru
          _
        // Predicated region
        $region33: #{tpu_custom_call.1} parent=15 // pred_check
          %p393 = pneg %p178
        $region34: #{tpu_custom_call.1} parent=15 // pred_check_branch
          %395 = sbr.rel (%p393) target = $region36
        $region35: #{tpu_custom_call.1} parent=15 // pred_region
          %s396 = sand.u32 %s32, 1
          %s397 = scalar_lea.sflag [#allocation10], %s396
          %s398 = sand.u32 %s168, 1
          %s399 = smul.addr %s398, 8
          %s400 = scalar_lea.vmem [#allocation11], %s399
          %s402 = ssub.s32 128, 128
          %403 = vsyncadd %s397, %s402
          %s404 = smul.addr %s39, 2
          %s405 = sadd.s32 %s40, %s404
          %s406 = smul.addr %s405, 128
          %s407 = scalar_lea.hbm %s4, %s406
          %s409 = sshll.u32 %s400, 4
          %s410 = int_to_ptr.vmem [resolvable:$true] %s409
          %412 = dma.hbm_to_vmem [thread:$0]  %s407, 128, %s410, %s397
        $region36: #{tpu_custom_call.1} parent=15 // pred_fallthru
          _
        // Predicated region
        $region37: #{tpu_custom_call.1} parent=15 // pred_check
          %p413 = pneg %p206
        $region38: #{tpu_custom_call.1} parent=15 // pred_check_branch
          %415 = sbr.rel (%p413) target = $region40
        $region39: #{tpu_custom_call.1} parent=15 // pred_region
          %s416 = sand.u32 %s32, 1
          %s417 = scalar_lea.sflag [#allocation13], %s416
          %s418 = sand.u32 %s196, 1
          %s419 = smul.addr %s418, 8
          %s420 = scalar_lea.vmem [#allocation12], %s419
          %s422 = ssub.s32 128, 128
          %423 = vsyncadd %s417, %s422
          %s424 = smul.addr %s39, 2
          %s425 = sadd.s32 %s40, %s424
          %s426 = smul.addr %s425, 128
          %s427 = scalar_lea.hbm %s5, %s426
          %s429 = sshll.u32 %s420, 4
          %s430 = int_to_ptr.vmem [resolvable:$true] %s429
          %432 = dma.hbm_to_vmem [thread:$0]  %s427, 128, %s430, %s417
        $region40: #{tpu_custom_call.1} parent=15 // pred_fallthru
          _
        // Predicated region
        $region41: #{tpu_custom_call.1} parent=15 // pred_check
          %p433 = pneg %p234
        $region42: #{tpu_custom_call.1} parent=15 // pred_check_branch
          %435 = sbr.rel (%p433) target = $region44
        $region43: #{tpu_custom_call.1} parent=15 // pred_region
          %s436 = sand.u32 %s32, 1
          %s437 = scalar_lea.sflag [#allocation13], %s436
          %s438 = sand.u32 %s224, 1
          %s439 = smul.addr %s438, 8
          %s440 = scalar_lea.vmem [#allocation14], %s439
          %s442 = ssub.s32 128, 128
          %443 = vsyncadd %s437, %s442
          %s444 = smul.addr %s39, 2
          %s445 = sadd.s32 %s40, %s444
          %s446 = smul.addr %s445, 128
          %s447 = scalar_lea.hbm %s6, %s446
          %s449 = sshll.u32 %s440, 4
          %s450 = int_to_ptr.vmem [resolvable:$true] %s449
          %452 = dma.hbm_to_vmem [thread:$0]  %s447, 128, %s450, %s437
        $region44: #{tpu_custom_call.1} parent=15 // pred_fallthru
          _
        // Predicated region
        $region45: #{tpu_custom_call.1} parent=15 // pred_check
          %p453 = pneg %p262
        $region46: #{tpu_custom_call.1} parent=15 // pred_check_branch
          %455 = sbr.rel (%p453) target = $region48
        $region47: #{tpu_custom_call.1} parent=15 // pred_region
          %s456 = sand.u32 %s252, 1
          %s457 = scalar_lea.sflag [#allocation16], %s456
          %s458 = sand.u32 %s252, 1
          %s459 = smul.addr %s458, 8
          %s460 = scalar_lea.vmem [#allocation15], %s459
          %s462 = ssub.s32 128, 128
          %463 = vsyncadd %s457, %s462
          %s464 = smul.addr %s39, 2
          %s465 = sadd.s32 %s40, %s464
          %s466 = smul.addr %s465, 128
          %s467 = scalar_lea.hbm %s7, %s466
          %s469 = sshll.u32 %s460, 4
          %s470 = int_to_ptr.vmem [resolvable:$true] %s469
          %472 = dma.hbm_to_vmem [thread:$0]  %s467, 128, %s470, %s457
        $region48: #{tpu_custom_call.1} parent=15 // pred_fallthru
          _
      $region16: #{tpu_custom_call.1} parent=5 // pred_fallthru
        _
      %p473 = scmp.le.s32.totalorder 1, %s32
      %p474 = scmp.lt.s32.totalorder %s32, 3
      %p475 = pnand %p473, %p474
      %p476 = pneg %p475
      // Predicated region
      $region49: #{tpu_custom_call.1} parent=5 // pred_check
        _
      $region50: #{tpu_custom_call.1} parent=5 // pred_check_branch
        %478 = sbr.rel (%p475) target = $region52
      $region51: #{tpu_custom_call.1} parent=5 // pred_region
        %s479 = ssub.s32 %s32, 1
        %s480 = sand.u32 %s59, 1
        %s481 = scalar_lea.sflag [#allocation4], %s480
        %s482 = sand.u32 %s59, 1
        %s483 = smul.addr %s482, 8
        %s484 = scalar_lea.vmem [#allocation3], %s483
        // Predicated region
        $region53: #{tpu_custom_call.1} parent=51 // pred_check
          %p485 = pneg %p72
        $region54: #{tpu_custom_call.1} parent=51 // pred_check_branch
          %487 = sbr.rel (%p485) target = $region56
        $region55: #{tpu_custom_call.1} parent=51 // pred_region
          %488 = dma.done %s481, 128
        $region56: #{tpu_custom_call.1} parent=51 // pred_fallthru
          _
        %s489 = sand.u32 %s37, 1
        %s490 = scalar_lea.sflag [#allocation7], %s489
        %s491 = sand.u32 %s87, 1
        %s492 = smul.addr %s491, 8
        %s493 = scalar_lea.vmem [#allocation6], %s492
        // Predicated region
        $region57: #{tpu_custom_call.1} parent=51 // pred_check
          %p494 = pneg %p100
        $region58: #{tpu_custom_call.1} parent=51 // pred_check_branch
          %496 = sbr.rel (%p494) target = $region60
        $region59: #{tpu_custom_call.1} parent=51 // pred_region
          %497 = dma.done %s490, 128
        $region60: #{tpu_custom_call.1} parent=51 // pred_fallthru
          _
        %s498 = sand.u32 %s37, 1
        %s499 = scalar_lea.sflag [#allocation7], %s498
        %s500 = sand.u32 %s115, 1
        %s501 = smul.addr %s500, 8
        %s502 = scalar_lea.vmem [#allocation8], %s501
        // Predicated region
        $region61: #{tpu_custom_call.1} parent=51 // pred_check
          %p503 = pneg %p128
        $region62: #{tpu_custom_call.1} parent=51 // pred_check_branch
          %505 = sbr.rel (%p503) target = $region64
        $region63: #{tpu_custom_call.1} parent=51 // pred_region
          %506 = dma.done %s499, 128
        $region64: #{tpu_custom_call.1} parent=51 // pred_fallthru
          _
        %s507 = sand.u32 %s37, 1
        %s508 = scalar_lea.sflag [#allocation10], %s507
        %s509 = sand.u32 %s143, 1
        %s510 = smul.addr %s509, 8
        %s511 = scalar_lea.vmem [#allocation9], %s510
        // Predicated region
        $region65: #{tpu_custom_call.1} parent=51 // pred_check
          %p512 = pneg %p156
        $region66: #{tpu_custom_call.1} parent=51 // pred_check_branch
          %514 = sbr.rel (%p512) target = $region68
        $region67: #{tpu_custom_call.1} parent=51 // pred_region
          %515 = dma.done %s508, 128
        $region68: #{tpu_custom_call.1} parent=51 // pred_fallthru
          _
        %s516 = sand.u32 %s37, 1
        %s517 = scalar_lea.sflag [#allocation10], %s516
        %s518 = sand.u32 %s171, 1
        %s519 = smul.addr %s518, 8
        %s520 = scalar_lea.vmem [#allocation11], %s519
        // Predicated region
        $region69: #{tpu_custom_call.1} parent=51 // pred_check
          %p521 = pneg %p184
        $region70: #{tpu_custom_call.1} parent=51 // pred_check_branch
          %523 = sbr.rel (%p521) target = $region72
        $region71: #{tpu_custom_call.1} parent=51 // pred_region
          %524 = dma.done %s517, 128
        $region72: #{tpu_custom_call.1} parent=51 // pred_fallthru
          _
        %s525 = sand.u32 %s37, 1
        %s526 = scalar_lea.sflag [#allocation13], %s525
        %s527 = sand.u32 %s199, 1
        %s528 = smul.addr %s527, 8
        %s529 = scalar_lea.vmem [#allocation12], %s528
        // Predicated region
        $region73: #{tpu_custom_call.1} parent=51 // pred_check
          %p530 = pneg %p212
        $region74: #{tpu_custom_call.1} parent=51 // pred_check_branch
          %532 = sbr.rel (%p530) target = $region76
        $region75: #{tpu_custom_call.1} parent=51 // pred_region
          %533 = dma.done %s526, 128
        $region76: #{tpu_custom_call.1} parent=51 // pred_fallthru
          _
        %s534 = sand.u32 %s37, 1
        %s535 = scalar_lea.sflag [#allocation13], %s534
        %s536 = sand.u32 %s227, 1
        %s537 = smul.addr %s536, 8
        %s538 = scalar_lea.vmem [#allocation14], %s537
        // Predicated region
        $region77: #{tpu_custom_call.1} parent=51 // pred_check
          %p539 = pneg %p240
        $region78: #{tpu_custom_call.1} parent=51 // pred_check_branch
          %541 = sbr.rel (%p539) target = $region80
        $region79: #{tpu_custom_call.1} parent=51 // pred_region
          %542 = dma.done %s535, 128
        $region80: #{tpu_custom_call.1} parent=51 // pred_fallthru
          _
        %s543 = sand.u32 %s255, 1
        %s544 = scalar_lea.sflag [#allocation16], %s543
        %s545 = sand.u32 %s255, 1
        %s546 = smul.addr %s545, 8
        %s547 = scalar_lea.vmem [#allocation15], %s546
        // Predicated region
        $region81: #{tpu_custom_call.1} parent=51 // pred_check
          %p548 = pneg %p268
        $region82: #{tpu_custom_call.1} parent=51 // pred_check_branch
          %550 = sbr.rel (%p548) target = $region84
        $region83: #{tpu_custom_call.1} parent=51 // pred_region
          %551 = dma.done %s544, 128
        $region84: #{tpu_custom_call.1} parent=51 // pred_fallthru
          _
        %s552 = sand.u32 %s59, 1
        %s553 = scalar_lea.sflag [#allocation4], %s552
        %s554 = sand.u32 %s59, 1
        %s555 = smul.addr %s554, 8
        %s556 = scalar_lea.vmem [#allocation3], %s555
        %p557 = pneg %p72
        %p558 = pneg %p69
        %s559 = sand.u32 %s37, 1
        %s560 = scalar_lea.sflag [#allocation7], %s559
        %s561 = sand.u32 %s87, 1
        %s562 = smul.addr %s561, 8
        %s563 = scalar_lea.vmem [#allocation6], %s562
        %p564 = pneg %p100
        %p565 = pneg %p97
        %s566 = sand.u32 %s37, 1
        %s567 = scalar_lea.sflag [#allocation7], %s566
        %s568 = sand.u32 %s115, 1
        %s569 = smul.addr %s568, 8
        %s570 = scalar_lea.vmem [#allocation8], %s569
        %p571 = pneg %p128
        %p572 = pneg %p125
        %s573 = sand.u32 %s37, 1
        %s574 = scalar_lea.sflag [#allocation10], %s573
        %s575 = sand.u32 %s143, 1
        %s576 = smul.addr %s575, 8
        %s577 = scalar_lea.vmem [#allocation9], %s576
        %p578 = pneg %p156
        %p579 = pneg %p153
        %s580 = sand.u32 %s37, 1
        %s581 = scalar_lea.sflag [#allocation10], %s580
        %s582 = sand.u32 %s171, 1
        %s583 = smul.addr %s582, 8
        %s584 = scalar_lea.vmem [#allocation11], %s583
        %p585 = pneg %p184
        %p586 = pneg %p181
        %s587 = sand.u32 %s37, 1
        %s588 = scalar_lea.sflag [#allocation13], %s587
        %s589 = sand.u32 %s199, 1
        %s590 = smul.addr %s589, 8
        %s591 = scalar_lea.vmem [#allocation12], %s590
        %p592 = pneg %p212
        %p593 = pneg %p209
        %s594 = sand.u32 %s37, 1
        %s595 = scalar_lea.sflag [#allocation13], %s594
        %s596 = sand.u32 %s227, 1
        %s597 = smul.addr %s596, 8
        %s598 = scalar_lea.vmem [#allocation14], %s597
        %p599 = pneg %p240
        %p600 = pneg %p237
        %s601 = sand.u32 %s255, 1
        %s602 = scalar_lea.sflag [#allocation16], %s601
        %s603 = sand.u32 %s255, 1
        %s604 = smul.addr %s603, 8
        %s605 = scalar_lea.vmem [#allocation15], %s604
        %p606 = pneg %p268
        %p607 = pneg %p265
        %p608 = pneg %p294
        %p609 = pneg %p291
        %s610 = sand.u32 %s281, 1
        %s611 = scalar_lea.sflag [#allocation5], %s610
        %s612 = sand.u32 %s281, 1
        %s613 = smul.addr %s612, 8
        %s614 = scalar_lea.vmem [#allocation17], %s613
        %p615 = scmp.eq.s32.totalorder %s42, 0
        // Predicated region
        $region85: #{tpu_custom_call.1} parent=51 // pred_check
          %p616 = pneg %p615
        $region86: #{tpu_custom_call.1} parent=51 // pred_check_branch
          %618 = sbr.rel (%p616) target = $region88
        $region87: #{tpu_custom_call.1} parent=51 // pred_region
          %619 = vst [vmem:[#allocation2] sm:$0xff] 0.0
        $region88: #{tpu_custom_call.1} parent=51 // pred_fallthru
          _
        %v620 = vld [vmem:[%s484] sm:$0xff]
        %v621 = vld [vmem:[%s493] sm:$0xff]
        %v622 = vld [vmem:[%s502] sm:$0xff]
        %v623 = vld [vmem:[%s511] sm:$0xff]
        %v624 = vld [vmem:[%s520] sm:$0xff]
        %v625 = vld [vmem:[%s529] sm:$0xff]
        %v626 = vld [vmem:[%s538] sm:$0xff]
        %v627 = vld [vmem:[%s547] sm:$0xff]
        %v628 = vmul.f32 %v621, %v620
        %v629 = vmul.f32 %v622, %v623
        %v630 = vadd.f32 %v628, %v629
        %v631 = vadd.f32 %v624, %v625
        %v632 = vmul.f32 %v631, 0.01
        %v633 = vsub.f32 %v630, %v632
        %v634 = vadd.f32 %v633, %v626
        %v635 = vsub.f32 %v634, %v627
        %v636 = vmul.f32 %v635, %v635
        %v637 = vld [vmem:[#allocation2] sm:$0xff]
        %v638 = vadd.f32 %v636, 0.0
        %v639 = vadd.f32 %v637, %v638
        %640 = vst [vmem:[#allocation2] sm:$0xff] %v639
        // Predicated region
        $region89: #{tpu_custom_call.1} parent=51 // pred_check
          %p641 = pneg %p615
        $region90: #{tpu_custom_call.1} parent=51 // pred_check_branch
          %643 = sbr.rel (%p641) target = $region92
        $region91: #{tpu_custom_call.1} parent=51 // pred_region
          %v644 = vld [vmem:[#allocation2] sm:$0xff]
          %645 = vst [vmem:[%s614] sm:$0xff] %v644
        $region92: #{tpu_custom_call.1} parent=51 // pred_fallthru
          _
        %s646 = sand.u32 %s281, 1
        %s647 = scalar_lea.sflag [#allocation5], %s646
        %s648 = sand.u32 %s281, 1
        %s649 = smul.addr %s648, 8
        %s650 = scalar_lea.vmem [#allocation17], %s649
        // Predicated region
        $region93: #{tpu_custom_call.1} parent=51 // pred_check
          %p651 = pneg %p291
        $region94: #{tpu_custom_call.1} parent=51 // pred_check_branch
          %653 = sbr.rel (%p651) target = $region96
        $region95: #{tpu_custom_call.1} parent=51 // pred_region
          %s655 = ssub.s32 128, 128
          %656 = vsyncadd %s647, %s655
          %s657 = smul.addr %s41, 128
          %s658 = scalar_lea.hbm %s8, %s657
          %s660 = sshll.u32 %s650, 4
          %s661 = int_to_ptr.vmem [resolvable:$true] %s660
          %663 = dma.vmem_to_hbm [thread:$0]  %s661, 128, %s658, %s647
        $region96: #{tpu_custom_call.1} parent=51 // pred_fallthru
          _
      $region52: #{tpu_custom_call.1} parent=5 // pred_fallthru
        _
      %p664 = scmp.le.s32.totalorder 2, %s32
      // Predicated region
      $region97: #{tpu_custom_call.1} parent=5 // pred_check
        %p665 = pneg %p664
      $region98: #{tpu_custom_call.1} parent=5 // pred_check_branch
        %667 = sbr.rel (%p665) target = $region100
      $region99: #{tpu_custom_call.1} parent=5 // pred_region
        %s668 = ssub.s32 %s32, 2
        // Predicated region
        $region101: #{tpu_custom_call.1} parent=99 // pred_check
          %p669 = pneg %p297
        $region102: #{tpu_custom_call.1} parent=99 // pred_check_branch
          %671 = sbr.rel (%p669) target = $region104
        $region103: #{tpu_custom_call.1} parent=99 // pred_region
          %s672 = sand.u32 %s282, 1
          %s673 = scalar_lea.sflag [#allocation5], %s672
          %s674 = sand.u32 %s282, 1
          %s675 = smul.addr %s674, 8
          %s676 = scalar_lea.vmem [#allocation17], %s675
          %677 = dma.done %s673, 128
        $region104: #{tpu_custom_call.1} parent=99 // pred_fallthru
          _
      $region100: #{tpu_custom_call.1} parent=5 // pred_fallthru
        _
    $region6: #{tpu_custom_call.1} parent=1 // loop_footer
      %s36 = sadd.s32 1, %s32
    $region7: #{tpu_custom_call.1} parent=1 // loop_footer_branch
      %31 = sbr.rel target = $region3
    $region8: #{tpu_custom_call.1} parent=1 // loop_exit
      _
    %678 = vsyncpa [#allocation4], 1
    %s679 = scalar_lea.sflag [#allocation4], 1
    %680 = vsyncpa %s679, 1
    %681 = vsyncpa [#allocation7], 1
    %s682 = scalar_lea.sflag [#allocation7], 1
    %683 = vsyncpa %s682, 1
    %684 = vsyncpa [#allocation10], 1
    %s685 = scalar_lea.sflag [#allocation10], 1
    %686 = vsyncpa %s685, 1
    %687 = vsyncpa [#allocation13], 1
    %s688 = scalar_lea.sflag [#allocation13], 1
    %689 = vsyncpa %s688, 1
    %690 = vsyncpa [#allocation16], 1
    %s691 = scalar_lea.sflag [#allocation16], 1
    %692 = vsyncpa %s691, 1
    %693 = vsyncpa [#allocation5], 1
    %s694 = scalar_lea.sflag [#allocation5], 1
    %695 = vsyncpa %s694, 1

</llo_original>
